<compile_context>
chip_gen: v6e
topology: v6e:2x2x1
jax: 0.10.0
libtpu: 0.0.40
codegen_flags: <defaults>
</compile_context>

<pallas_src>
import functools

import jax
import jax.numpy as jnp
from jax.experimental import pallas as pl
from jax.experimental.pallas import tpu as pltpu

K_IN, H1, H2, OUT = 331, 100, 50, 1
H1_PAD, H2_PAD, OUT_PAD = 128, 128, 8  # hidden dims lane-aligned; output kept tiny


def _round_up(n, m):
    return ((n + m - 1) // m) * m


def mlp_kernel(x_ref, w1_ref, b1_ref, w2_ref, b2_ref, w3_ref, b3_ref, o_ref):
    # Cast x to bf16 in-kernel (cheap VPU pack) so all matmuls feed the bf16 MXU;
    # accumulation stays f32 via preferred_element_type.
    x = x_ref[...].astype(jnp.bfloat16)
    # Linear(331->100) + ReLU   (padded cols 100..127 stay exactly zero)
    h1 = jnp.dot(x, w1_ref[...], preferred_element_type=jnp.float32)
    h1 = jnp.maximum(h1 + b1_ref[...], 0.0)
    # Linear(100->50) + ReLU    (padded cols 50..127 stay exactly zero)
    h2 = jnp.dot(h1.astype(jnp.bfloat16), w2_ref[...],
                 preferred_element_type=jnp.float32)
    h2 = jnp.maximum(h2 + b2_ref[...], 0.0)
    # Linear(50->1), padded to 8 output lanes (cols 1..7 are exact zeros).
    out = jnp.dot(h2.astype(jnp.bfloat16), w3_ref[...],
                  preferred_element_type=jnp.float32)
    o_ref[...] = out + b3_ref[...]


def init_params(key):
    """Deterministic init matching PyTorch's default (uniform +-1/sqrt(fan_in)),
    weights stored as (in, out) so the kernel computes x @ W + b."""
    k1, k2, k3, k4, k5, k6 = jax.random.split(key, 6)

    def lin(kw, kb, fan_in, fan_out):
        bound = 1.0 / jnp.sqrt(jnp.float32(fan_in))
        w = jax.random.uniform(kw, (fan_in, fan_out), jnp.float32, -bound, bound)
        b = jax.random.uniform(kb, (1, fan_out), jnp.float32, -bound, bound)
        return w, b

    w1, b1 = lin(k1, k2, K_IN, H1)
    w2, b2 = lin(k3, k4, H1, H2)
    w3, b3 = lin(k5, k6, H2, OUT)
    return (w1, b1, w2, b2, w3, b3)


def prepare_params(params):
    """One-time layout work: zero-pad hidden/output dims and cast weights to
    bf16 (biases stay f32, added to the f32 accumulator). x is NOT padded."""
    w1, b1, w2, b2, w3, b3 = params

    def pad2(a, r, c):
        return jnp.pad(a, ((0, r - a.shape[0]), (0, c - a.shape[1])))

    w1p = pad2(w1, K_IN, H1_PAD).astype(jnp.bfloat16)      # (331, 128)
    w2p = pad2(w2, H1_PAD, H2_PAD).astype(jnp.bfloat16)    # (128, 128)
    w3p = pad2(w3, H2_PAD, OUT_PAD).astype(jnp.bfloat16)   # (128, 8)
    b1p = pad2(b1, 1, H1_PAD).astype(jnp.float32)
    b2p = pad2(b2, 1, H2_PAD).astype(jnp.float32)
    b3p = pad2(b3, 1, OUT_PAD).astype(jnp.float32)
    return (w1p, b1p, w2p, b2p, w3p, b3p)


@functools.partial(jax.jit, static_argnames=("tile_b",))
def mymodel_forward(x, prepared_params, tile_b=2048):
    """Forward pass. `prepared_params` come from prepare_params(init_params(...))."""
    w1p, b1p, w2p, b2p, w3p, b3p = prepared_params

    # nn.Flatten(): collapse trailing dims into the feature dim (no data movement
    # for contiguous inputs).
    b = x.shape[0]
    x2d = x.reshape(b, -1)
    assert x2d.shape[1] == K_IN

    # Batch only rounded to a sublane multiple when needed (<=7 pad rows);
    # the common b % 8 == 0 case touches x zero extra times in HBM.
    b8 = _round_up(b, 8)
    if b8 != b:
        x2d = jnp.pad(x2d, ((0, b8 - b), (0, 0)))

    # Batch tile: big (2048 rows ~ 2.7 MiB f32 x-tile, double-buffered ~5.5 MiB
    # VMEM total), but split so the grid has >= 2 steps when the batch allows it
    # (dual TensorCores on v7x). cdiv + Pallas partial-block masking means no
    # pathological padding for awkward batch sizes.
    tb = min(tile_b, b8)
    if b8 > 8 and b8 // tb < 2:
        tb = _round_up(pl.cdiv(b8, 2), 8)
    grid = (pl.cdiv(b8, tb),)

    out = pl.pallas_call(
        mlp_kernel,
        out_shape=jax.ShapeDtypeStruct((b8, OUT_PAD), jnp.float32),
        grid_spec=pltpu.PrefetchScalarGridSpec(
            num_scalar_prefetch=0,
            grid=grid,
            in_specs=[
                pl.BlockSpec((tb, K_IN), lambda i: (i, 0)),        # x (pipelined, f32, unpadded)
                pl.BlockSpec((K_IN, H1_PAD), lambda i: (0, 0)),    # w1 (resident bf16)
                pl.BlockSpec((1, H1_PAD), lambda i: (0, 0)),       # b1
                pl.BlockSpec((H1_PAD, H2_PAD), lambda i: (0, 0)),  # w2
                pl.BlockSpec((1, H2_PAD), lambda i: (0, 0)),       # b2
                pl.BlockSpec((H2_PAD, OUT_PAD), lambda i: (0, 0)), # w3
                pl.BlockSpec((1, OUT_PAD), lambda i: (0, 0)),      # b3
            ],
            out_specs=pl.BlockSpec((tb, OUT_PAD), lambda i: (i, 0)),
        ),
        compiler_params=pltpu.CompilerParams(
            dimension_semantics=("parallel",),
            vmem_limit_bytes=32 << 20),
    )(x2d, w1p, b1p, w2p, b2p, w3p, b3p)

    # Drop batch padding (if any) and the 7 zero output lanes.
    return out[:b, :OUT]


if __name__ == "__main__":
    key = jax.random.PRNGKey(0)
    kp, kx = jax.random.split(key)
    params = init_params(kp)
    prepared = prepare_params(params)

    batch = 16  # small; also exercises the >=2 grid-step path
    x = jax.random.normal(kx, (batch, K_IN), dtype=jnp.float32)

    y = mymodel_forward(x, prepared)
    y = jax.block_until_ready(y)

    # Reference in plain f32 JAX (same math as the PyTorch module). Kernel uses
    # bf16 weights/activations on the MXU, so allow small drift.
    w1, b1, w2, b2, w3, b3 = params
    h1 = jnp.maximum(x @ w1 + b1, 0.0)
    h2 = jnp.maximum(h1 @ w2 + b2, 0.0)
    y_ref = h2 @ w3 + b3

    assert y.shape == (batch, 1)
    assert jnp.allclose(y, y_ref, atol=3e-2, rtol=3e-2), float(
        jnp.max(jnp.abs(y - y_ref)))

    print("KERNEL_OK")
</pallas_src>

<mosaic_0001>
module attributes {stable_mosaic.version = 11 : i64} {
  func.func @mlp_kernel(%arg0: i32, %arg1: memref<8x331xf32, #tpu.memory_space<vmem>>, %arg2: memref<331x128xbf16, #tpu.memory_space<vmem>>, %arg3: memref<1x128xf32, #tpu.memory_space<vmem>>, %arg4: memref<128x128xbf16, #tpu.memory_space<vmem>>, %arg5: memref<1x128xf32, #tpu.memory_space<vmem>>, %arg6: memref<128x8xbf16, #tpu.memory_space<vmem>>, %arg7: memref<1x8xf32, #tpu.memory_space<vmem>>, %arg8: memref<8x8xf32, #tpu.memory_space<vmem>>) attributes {dimension_semantics = [#tpu.dimension_semantics<parallel>], iteration_bounds = array<i64: 2>, scalar_prefetch = 0 : i64, scratch_operands = 0 : i64, tpu.core_type = #tpu.core_type<tc>, window_params = [{transform_indices = @transform_0, window_bounds = array<i64: 8, 331>}, {pipeline_mode = #tpu.pipeline_mode<synchronous>, transform_indices = @transform_1, window_bounds = array<i64: 331, 128>}, {pipeline_mode = #tpu.pipeline_mode<synchronous>, transform_indices = @transform_2, window_bounds = array<i64: 1, 128>}, {pipeline_mode = #tpu.pipeline_mode<synchronous>, transform_indices = @transform_3, window_bounds = array<i64: 128, 128>}, {pipeline_mode = #tpu.pipeline_mode<synchronous>, transform_indices = @transform_4, window_bounds = array<i64: 1, 128>}, {pipeline_mode = #tpu.pipeline_mode<synchronous>, transform_indices = @transform_5, window_bounds = array<i64: 128, 8>}, {pipeline_mode = #tpu.pipeline_mode<synchronous>, transform_indices = @transform_6, window_bounds = array<i64: 1, 8>}, {transform_indices = @transform_7, window_bounds = array<i64: 8, 8>}]} {
    %c0 = arith.constant 0 : index
    %c0_0 = arith.constant 0 : index
    %0 = vector.load %arg1[%c0, %c0_0] : memref<8x331xf32, #tpu.memory_space<vmem>>, vector<8x331xf32>
    %1 = arith.truncf %0 : vector<8x331xf32> to vector<8x331xbf16>
    %c0_1 = arith.constant 0 : index
    %c0_2 = arith.constant 0 : index
    %2 = vector.load %arg2[%c0_1, %c0_2] : memref<331x128xbf16, #tpu.memory_space<vmem>>, vector<331x128xbf16>
    %cst = arith.constant dense<0.000000e+00> : vector<8x128xf32>
    %3 = tpu.matmul %1, %2, %cst {dimension_numbers = #tpu.dot_dimension_numbers<[1], [0], [0], [1], [0, 0, 1, 1], [], []>} : vector<8x331xbf16>, vector<331x128xbf16>, vector<8x128xf32> -> vector<8x128xf32>
    %c0_3 = arith.constant 0 : index
    %c0_4 = arith.constant 0 : index
    %4 = vector.load %arg3[%c0_3, %c0_4] : memref<1x128xf32, #tpu.memory_space<vmem>>, vector<1x128xf32>
    %5 = vector.broadcast %4 : vector<1x128xf32> to vector<8x128xf32>
    %6 = arith.addf %3, %5 : vector<8x128xf32>
    %cst_5 = arith.constant 0.000000e+00 : f32
    %7 = vector.broadcast %cst_5 : f32 to vector<8x128xf32>
    %8 = arith.maximumf %6, %7 : vector<8x128xf32>
    %9 = arith.truncf %8 : vector<8x128xf32> to vector<8x128xbf16>
    %c0_6 = arith.constant 0 : index
    %c0_7 = arith.constant 0 : index
    %10 = vector.load %arg4[%c0_6, %c0_7] : memref<128x128xbf16, #tpu.memory_space<vmem>>, vector<128x128xbf16>
    %cst_8 = arith.constant dense<0.000000e+00> : vector<8x128xf32>
    %11 = tpu.matmul %9, %10, %cst_8 {dimension_numbers = #tpu.dot_dimension_numbers<[1], [0], [0], [1], [0, 0, 1, 1], [], []>} : vector<8x128xbf16>, vector<128x128xbf16>, vector<8x128xf32> -> vector<8x128xf32>
    %c0_9 = arith.constant 0 : index
    %c0_10 = arith.constant 0 : index
    %12 = vector.load %arg5[%c0_9, %c0_10] : memref<1x128xf32, #tpu.memory_space<vmem>>, vector<1x128xf32>
    %13 = vector.broadcast %12 : vector<1x128xf32> to vector<8x128xf32>
    %14 = arith.addf %11, %13 : vector<8x128xf32>
    %cst_11 = arith.constant 0.000000e+00 : f32
    %15 = vector.broadcast %cst_11 : f32 to vector<8x128xf32>
    %16 = arith.maximumf %14, %15 : vector<8x128xf32>
    %17 = arith.truncf %16 : vector<8x128xf32> to vector<8x128xbf16>
    %c0_12 = arith.constant 0 : index
    %c0_13 = arith.constant 0 : index
    %18 = vector.load %arg6[%c0_12, %c0_13] : memref<128x8xbf16, #tpu.memory_space<vmem>>, vector<128x8xbf16>
    %cst_14 = arith.constant dense<0.000000e+00> : vector<8x8xf32>
    %19 = tpu.matmul %17, %18, %cst_14 {dimension_numbers = #tpu.dot_dimension_numbers<[1], [0], [0], [1], [0, 0, 1, 1], [], []>} : vector<8x128xbf16>, vector<128x8xbf16>, vector<8x8xf32> -> vector<8x8xf32>
    %c0_15 = arith.constant 0 : index
    %c0_16 = arith.constant 0 : index
    %20 = vector.load %arg7[%c0_15, %c0_16] : memref<1x8xf32, #tpu.memory_space<vmem>>, vector<1x8xf32>
    %21 = vector.broadcast %20 : vector<1x8xf32> to vector<8x8xf32>
    %22 = arith.addf %19, %21 : vector<8x8xf32>
    %c0_17 = arith.constant 0 : index
    %c0_18 = arith.constant 0 : index
    %23 = vector.load %arg8[%c0_17, %c0_18] : memref<8x8xf32, #tpu.memory_space<vmem>>, vector<8x8xf32>
    tpu.vector_store %arg8[%c0_17, %c0_18], %22 {strides = array<i32>} : memref<8x8xf32, #tpu.memory_space<vmem>>, vector<8x8xf32>,
    return
  }
  func.func @transform_0(%arg0: i32) -> (i32, i32) {
    %c0_i32 = arith.constant 0 : i32
    %c0_i32_0 = arith.constant 0 : i32
    return %arg0, %c0_i32 : i32, i32
  }
  func.func @transform_1(%arg0: i32) -> (i32, i32) {
    %c0_i32 = arith.constant 0 : i32
    %c0_i32_0 = arith.constant 0 : i32
    %c0_i32_1 = arith.constant 0 : i32
    return %c0_i32, %c0_i32_0 : i32, i32
  }
  func.func @transform_2(%arg0: i32) -> (i32, i32) {
    %c0_i32 = arith.constant 0 : i32
    %c0_i32_0 = arith.constant 0 : i32
    %c0_i32_1 = arith.constant 0 : i32
    return %c0_i32, %c0_i32_0 : i32, i32
  }
  func.func @transform_3(%arg0: i32) -> (i32, i32) {
    %c0_i32 = arith.constant 0 : i32
    %c0_i32_0 = arith.constant 0 : i32
    %c0_i32_1 = arith.constant 0 : i32
    return %c0_i32, %c0_i32_0 : i32, i32
  }
  func.func @transform_4(%arg0: i32) -> (i32, i32) {
    %c0_i32 = arith.constant 0 : i32
    %c0_i32_0 = arith.constant 0 : i32
    %c0_i32_1 = arith.constant 0 : i32
    return %c0_i32, %c0_i32_0 : i32, i32
  }
  func.func @transform_5(%arg0: i32) -> (i32, i32) {
    %c0_i32 = arith.constant 0 : i32
    %c0_i32_0 = arith.constant 0 : i32
    %c0_i32_1 = arith.constant 0 : i32
    return %c0_i32, %c0_i32_0 : i32, i32
  }
  func.func @transform_6(%arg0: i32) -> (i32, i32) {
    %c0_i32 = arith.constant 0 : i32
    %c0_i32_0 = arith.constant 0 : i32
    %c0_i32_1 = arith.constant 0 : i32
    return %c0_i32, %c0_i32_0 : i32, i32
  }
  func.func @transform_7(%arg0: i32) -> (i32, i32) {
    %c0_i32 = arith.constant 0 : i32
    %c0_i32_0 = arith.constant 0 : i32
    return %arg0, %c0_i32 : i32, i32
  }
}

</mosaic_0001>

<llo_original>
// kernel: mymodel_forward.1
$region0: #{mymodel_forward.1}
  #allocation0 [shape = 'u32[]', space=smem, size = 0x4, offset = 0x4, fixed_abs, tag = 'smem constant byte address 0x4 - core index']
  #allocation1 [shape = 'u32[144,128]{1,0:T(1,128)}', space=vmem, size = 0x12000, scoped, tag = 'internal scratch']
  %s0 = inlined_call_operand.hbm [shape: f32[16,331], index: 0, kind: input, shape index: {}]
  %s1 = inlined_call_operand.hbm [shape: bf16[331,128], index: 1, kind: input, shape index: {}]
  %s2 = inlined_call_operand.vmem [shape: f32[1,128], index: 2, kind: input, shape index: {}]
  %s3 = inlined_call_operand.vmem [shape: bf16[128,128], index: 3, kind: input, shape index: {}]
  %s4 = inlined_call_operand.vmem [shape: f32[1,128], index: 4, kind: input, shape index: {}]
  %s5 = inlined_call_operand.vmem [shape: bf16[128,8], index: 5, kind: input, shape index: {}]
  %s6 = inlined_call_operand.vmem [shape: f32[1,8], index: 6, kind: input, shape index: {}]
  %s7 = inlined_call_operand.vmem [shape: f32[16,8], index: 7, kind: output, shape index: {}]
  %s8 = sld [smem:[#allocation0]]
  $region69: #{mymodel_forward.1} parent=0
    _
  %s10 = ssub.s32 1, %s8
  %s11 = scalar_select 0, %s10, %s8
  $region1: #{mymodel_forward.1} parent=0
    #allocation2 [shape = 'u8[24576]{0}', space=vmem, size = 0x6000, scoped, tag = 'input window, operand 0']
    #allocation3 [shape = 's32[2]{0}', space=sflag, size = 0x8, scoped, tag = 'scoped memory for mymodel_forward.1']
    #allocation4 [shape = 'u8[86016]{0}', space=vmem, size = 0x15000, scoped, tag = 'input window, operand 1, single buffered']
    #allocation5 [shape = 's32[1]{0}', space=sflag, size = 0x4, scoped, tag = 'scoped memory for mymodel_forward.1']
    %12 = vsyncpa [#allocation3], 0
    %s13 = scalar_lea.sflag [#allocation3], 1
    %14 = vsyncpa %s13, 0
    %15 = vsyncpa [#allocation5], 0
    loop: start=0, step=1, limit=4
    $region2: #{mymodel_forward.1} parent=1 // loop_pre_header
      _
    $region3: #{mymodel_forward.1} parent=1 // loop_header
      %s17 = sphi 0, %s21
      %p18 = scmp.ge.s32.totalorder %s17, 4
      %s27 = sphi 0, %s29
      %s30 = sphi 0, %s27
      %s31 = sphi 0, %s30
      %s47 = sphi 0, %s31
      %s51 = sphi 0, %s51
      %s53 = sphi 0, %s51
      %s54 = sphi 0, %s53
      %s68 = sphi 0, %s54
      %s72 = sphi 0, %s72
      %s74 = sphi 0, %s72
      %s75 = sphi 0, %s74
      %s89 = sphi 0, %s75
      %s93 = sphi 0, %s93
      %s95 = sphi 0, %s93
      %s96 = sphi 0, %s95
      %s110 = sphi 0, %s96
      %s114 = sphi 0, %s114
      %s116 = sphi 0, %s114
      %s117 = sphi 0, %s116
      %s131 = sphi 0, %s117
      %s135 = sphi 0, %s135
      %s137 = sphi 0, %s135
      %s138 = sphi 0, %s137
      %s152 = sphi 0, %s138
      %s156 = sphi 0, %s156
      %s158 = sphi 0, %s156
      %s159 = sphi 0, %s158
      %s173 = sphi 0, %s159
      %s179 = sphi 0, %s181
      %s182 = sphi 0, %s179
      %s183 = sphi 0, %s182
      %s199 = sphi 0, %s183
    $region4: #{mymodel_forward.1} parent=1 // loop_header_branch
      %20 = sbr.rel (%p18) target = $region8
    $region5: #{mymodel_forward.1} parent=1 // loop_body
      %s22 = ssub.s32 %s17, 1
      %s23 = ssub.s32 %s17, 2
      %s24 = sadd.s32 %s17, 1
      %s25 = ssub.s32 %s17, %s24
      %p26 = scmp.eq.s32.totalorder %s25, 0
      %s28 = sadd.s32 %s27, 1
      %s29 = scalar_select %p26, %s27, %s28
      %p32 = pneg %p26
      %p33 = scmp.eq.s32.totalorder %s17, 1
      %p34 = por %p32, %p33
      %p35 = scmp.ne.s32.totalorder %s27, %s30
      %p36 = scmp.eq.s32.totalorder %s17, 0
      %p37 = por %p35, %p36
      %p38 = scmp.ne.s32.totalorder %s27, %s30
      %p39 = scmp.eq.s32.totalorder %s22, 1
      %p40 = por %p38, %p39
      %p41 = scmp.ne.s32.totalorder %s30, %s31
      %p42 = scmp.eq.s32.totalorder %s22, 0
      %p43 = por %p41, %p42
      %p44 = scmp.ne.s32.totalorder %s30, %s31
      %p45 = scmp.eq.s32.totalorder %s23, 1
      %p46 = por %p44, %p45
      %p48 = scmp.ne.s32.totalorder %s31, %s47
      %p49 = scmp.eq.s32.totalorder %s23, 0
      %p50 = por %p48, %p49
      %s52 = sadd.s32 %s51, 1
      %p55 = scmp.eq.s32.totalorder %s17, 1
      %p56 = scmp.ne.s32.totalorder %s51, %s53
      %p57 = scmp.eq.s32.totalorder %s17, 0
      %p58 = por %p56, %p57
      %p59 = scmp.ne.s32.totalorder %s51, %s53
      %p60 = scmp.eq.s32.totalorder %s22, 1
      %p61 = por %p59, %p60
      %p62 = scmp.ne.s32.totalorder %s53, %s54
      %p63 = scmp.eq.s32.totalorder %s22, 0
      %p64 = por %p62, %p63
      %p65 = scmp.ne.s32.totalorder %s53, %s54
      %p66 = scmp.eq.s32.totalorder %s23, 1
      %p67 = por %p65, %p66
      %p69 = scmp.ne.s32.totalorder %s54, %s68
      %p70 = scmp.eq.s32.totalorder %s23, 0
      %p71 = por %p69, %p70
      %s73 = sadd.s32 %s72, 1
      %p76 = scmp.eq.s32.totalorder %s17, 1
      %p77 = scmp.ne.s32.totalorder %s72, %s74
      %p78 = scmp.eq.s32.totalorder %s17, 0
      %p79 = por %p77, %p78
      %p80 = scmp.ne.s32.totalorder %s72, %s74
      %p81 = scmp.eq.s32.totalorder %s22, 1
      %p82 = por %p80, %p81
      %p83 = scmp.ne.s32.totalorder %s74, %s75
      %p84 = scmp.eq.s32.totalorder %s22, 0
      %p85 = por %p83, %p84
      %p86 = scmp.ne.s32.totalorder %s74, %s75
      %p87 = scmp.eq.s32.totalorder %s23, 1
      %p88 = por %p86, %p87
      %p90 = scmp.ne.s32.totalorder %s75, %s89
      %p91 = scmp.eq.s32.totalorder %s23, 0
      %p92 = por %p90, %p91
      %s94 = sadd.s32 %s93, 1
      %p97 = scmp.eq.s32.totalorder %s17, 1
      %p98 = scmp.ne.s32.totalorder %s93, %s95
      %p99 = scmp.eq.s32.totalorder %s17, 0
      %p100 = por %p98, %p99
      %p101 = scmp.ne.s32.totalorder %s93, %s95
      %p102 = scmp.eq.s32.totalorder %s22, 1
      %p103 = por %p101, %p102
      %p104 = scmp.ne.s32.totalorder %s95, %s96
      %p105 = scmp.eq.s32.totalorder %s22, 0
      %p106 = por %p104, %p105
      %p107 = scmp.ne.s32.totalorder %s95, %s96
      %p108 = scmp.eq.s32.totalorder %s23, 1
      %p109 = por %p107, %p108
      %p111 = scmp.ne.s32.totalorder %s96, %s110
      %p112 = scmp.eq.s32.totalorder %s23, 0
      %p113 = por %p111, %p112
      %s115 = sadd.s32 %s114, 1
      %p118 = scmp.eq.s32.totalorder %s17, 1
      %p119 = scmp.ne.s32.totalorder %s114, %s116
      %p120 = scmp.eq.s32.totalorder %s17, 0
      %p121 = por %p119, %p120
      %p122 = scmp.ne.s32.totalorder %s114, %s116
      %p123 = scmp.eq.s32.totalorder %s22, 1
      %p124 = por %p122, %p123
      %p125 = scmp.ne.s32.totalorder %s116, %s117
      %p126 = scmp.eq.s32.totalorder %s22, 0
      %p127 = por %p125, %p126
      %p128 = scmp.ne.s32.totalorder %s116, %s117
      %p129 = scmp.eq.s32.totalorder %s23, 1
      %p130 = por %p128, %p129
      %p132 = scmp.ne.s32.totalorder %s117, %s131
      %p133 = scmp.eq.s32.totalorder %s23, 0
      %p134 = por %p132, %p133
      %s136 = sadd.s32 %s135, 1
      %p139 = scmp.eq.s32.totalorder %s17, 1
      %p140 = scmp.ne.s32.totalorder %s135, %s137
      %p141 = scmp.eq.s32.totalorder %s17, 0
      %p142 = por %p140, %p141
      %p143 = scmp.ne.s32.totalorder %s135, %s137
      %p144 = scmp.eq.s32.totalorder %s22, 1
      %p145 = por %p143, %p144
      %p146 = scmp.ne.s32.totalorder %s137, %s138
      %p147 = scmp.eq.s32.totalorder %s22, 0
      %p148 = por %p146, %p147
      %p149 = scmp.ne.s32.totalorder %s137, %s138
      %p150 = scmp.eq.s32.totalorder %s23, 1
      %p151 = por %p149, %p150
      %p153 = scmp.ne.s32.totalorder %s138, %s152
      %p154 = scmp.eq.s32.totalorder %s23, 0
      %p155 = por %p153, %p154
      %s157 = sadd.s32 %s156, 1
      %p160 = scmp.eq.s32.totalorder %s17, 1
      %p161 = scmp.ne.s32.totalorder %s156, %s158
      %p162 = scmp.eq.s32.totalorder %s17, 0
      %p163 = por %p161, %p162
      %p164 = scmp.ne.s32.totalorder %s156, %s158
      %p165 = scmp.eq.s32.totalorder %s22, 1
      %p166 = por %p164, %p165
      %p167 = scmp.ne.s32.totalorder %s158, %s159
      %p168 = scmp.eq.s32.totalorder %s22, 0
      %p169 = por %p167, %p168
      %p170 = scmp.ne.s32.totalorder %s158, %s159
      %p171 = scmp.eq.s32.totalorder %s23, 1
      %p172 = por %p170, %p171
      %p174 = scmp.ne.s32.totalorder %s159, %s173
      %p175 = scmp.eq.s32.totalorder %s23, 0
      %p176 = por %p174, %p175
      %s177 = ssub.s32 %s17, %s24
      %p178 = scmp.eq.s32.totalorder %s177, 0
      %s180 = sadd.s32 %s179, 1
      %s181 = scalar_select %p178, %s179, %s180
      %p184 = pneg %p178
      %p185 = scmp.eq.s32.totalorder %s17, 1
      %p186 = por %p184, %p185
      %p187 = scmp.ne.s32.totalorder %s179, %s182
      %p188 = scmp.eq.s32.totalorder %s17, 0
      %p189 = por %p187, %p188
      %p190 = scmp.ne.s32.totalorder %s179, %s182
      %p191 = scmp.eq.s32.totalorder %s22, 1
      %p192 = por %p190, %p191
      %p193 = scmp.ne.s32.totalorder %s182, %s183
      %p194 = scmp.eq.s32.totalorder %s22, 0
      %p195 = por %p193, %p194
      %p196 = scmp.ne.s32.totalorder %s182, %s183
      %p197 = scmp.eq.s32.totalorder %s23, 1
      %p198 = por %p196, %p197
      %p200 = scmp.ne.s32.totalorder %s183, %s199
      %p201 = scmp.eq.s32.totalorder %s23, 0
      %p202 = por %p200, %p201
      %p203 = scmp.le.s32.totalorder 1, %s17
      %p204 = scmp.lt.s32.totalorder %s17, 3
      %p205 = pnand %p203, %p204
      %p206 = pneg %p205
      // Predicated region
      $region9: #{mymodel_forward.1} parent=5 // pred_check
        _
      $region10: #{mymodel_forward.1} parent=5 // pred_check_branch
        %208 = sbr.rel (%p205) target = $region12
      $region11: #{mymodel_forward.1} parent=5 // pred_region
        %s209 = ssub.s32 %s17, 1
        // Predicated region
        $region13: #{mymodel_forward.1} parent=11 // pred_check
          %p210 = pneg %p64
        $region14: #{mymodel_forward.1} parent=11 // pred_check_branch
          %212 = sbr.rel (%p210) target = $region16
        $region15: #{mymodel_forward.1} parent=11 // pred_region
          %s214 = ssub.s32 2688, 2688
          %215 = vsyncadd [#allocation5], %s214
          %s216 = sshll.u32 [#allocation4], 4
          %s217 = int_to_ptr.vmem [resolvable:$true] %s216
          %222 = dma.hbm_to_vmem [thread:$0]  %s1, 2688, %s217, [#allocation5], 64, 64, 4
        $region16: #{mymodel_forward.1} parent=11 // pred_fallthru
          _
        // Predicated region
        $region17: #{mymodel_forward.1} parent=11 // pred_check
          %p223 = pneg %p85
        $region18: #{mymodel_forward.1} parent=11 // pred_check_branch
          %225 = sbr.rel (%p223) target = $region20
        $region19: #{mymodel_forward.1} parent=11 // pred_region
          _
        $region20: #{mymodel_forward.1} parent=11 // pred_fallthru
          _
        // Predicated region
        $region21: #{mymodel_forward.1} parent=11 // pred_check
          %p226 = pneg %p106
        $region22: #{mymodel_forward.1} parent=11 // pred_check_branch
          %228 = sbr.rel (%p226) target = $region24
        $region23: #{mymodel_forward.1} parent=11 // pred_region
          _
        $region24: #{mymodel_forward.1} parent=11 // pred_fallthru
          _
        // Predicated region
        $region25: #{mymodel_forward.1} parent=11 // pred_check
          %p229 = pneg %p127
        $region26: #{mymodel_forward.1} parent=11 // pred_check_branch
          %231 = sbr.rel (%p229) target = $region28
        $region27: #{mymodel_forward.1} parent=11 // pred_region
          _
        $region28: #{mymodel_forward.1} parent=11 // pred_fallthru
          _
        // Predicated region
        $region29: #{mymodel_forward.1} parent=11 // pred_check
          %p232 = pneg %p148
        $region30: #{mymodel_forward.1} parent=11 // pred_check_branch
          %234 = sbr.rel (%p232) target = $region32
        $region31: #{mymodel_forward.1} parent=11 // pred_region
          _
        $region32: #{mymodel_forward.1} parent=11 // pred_fallthru
          _
        // Predicated region
        $region33: #{mymodel_forward.1} parent=11 // pred_check
          %p235 = pneg %p169
        $region34: #{mymodel_forward.1} parent=11 // pred_check_branch
          %237 = sbr.rel (%p235) target = $region36
        $region35: #{mymodel_forward.1} parent=11 // pred_region
          _
        $region36: #{mymodel_forward.1} parent=11 // pred_fallthru
          _
      $region12: #{mymodel_forward.1} parent=5 // pred_fallthru
        _
      %p238 = scmp.lt.s32.totalorder %s17, 2
      // Predicated region
      $region37: #{mymodel_forward.1} parent=5 // pred_check
        %p239 = pneg %p238
      $region38: #{mymodel_forward.1} parent=5 // pred_check_branch
        %241 = sbr.rel (%p239) target = $region40
      $region39: #{mymodel_forward.1} parent=5 // pred_region
        // Predicated region
        $region41: #{mymodel_forward.1} parent=39 // pred_check
          %p242 = pneg %p37
        $region42: #{mymodel_forward.1} parent=39 // pred_check_branch
          %244 = sbr.rel (%p242) target = $region44
        $region43: #{mymodel_forward.1} parent=39 // pred_region
          %s245 = sand.u32 %s27, 1
          %s246 = scalar_lea.sflag [#allocation3], %s245
          %s247 = sand.u32 %s27, 1
          %s248 = smul.addr %s247, 24
          %s249 = scalar_lea.vmem [#allocation2], %s248
          %s251 = ssub.s32 384, 384
          %252 = vsyncadd %s246, %s251
          %s253 = smul.addr %s17, 3
          %s254 = smul.addr %s253, 128
          %s255 = scalar_lea.hbm %s0, %s254
          %s257 = sshll.u32 %s249, 4
          %s258 = int_to_ptr.vmem [resolvable:$true] %s257
          %260 = dma.hbm_to_vmem [thread:$0]  %s255, 384, %s258, %s246
        $region44: #{mymodel_forward.1} parent=39 // pred_fallthru
          _
      $region40: #{mymodel_forward.1} parent=5 // pred_fallthru
        _
      %p261 = scmp.le.s32.totalorder 1, %s17
      %p262 = scmp.lt.s32.totalorder %s17, 3
      %p263 = pnand %p261, %p262
      %p264 = pneg %p263
      // Predicated region
      $region45: #{mymodel_forward.1} parent=5 // pred_check
        _
      $region46: #{mymodel_forward.1} parent=5 // pred_check_branch
        %266 = sbr.rel (%p263) target = $region48
      $region47: #{mymodel_forward.1} parent=5 // pred_region
        %s267 = ssub.s32 %s17, 1
        %s268 = sand.u32 %s30, 1
        %s269 = scalar_lea.sflag [#allocation3], %s268
        %s270 = sand.u32 %s30, 1
        %s271 = smul.addr %s270, 24
        %s272 = scalar_lea.vmem [#allocation2], %s271
        // Predicated region
        $region49: #{mymodel_forward.1} parent=47 // pred_check
          %p273 = pneg %p43
        $region50: #{mymodel_forward.1} parent=47 // pred_check_branch
          %275 = sbr.rel (%p273) target = $region52
        $region51: #{mymodel_forward.1} parent=47 // pred_region
          %276 = dma.done %s269, 384
        $region52: #{mymodel_forward.1} parent=47 // pred_fallthru
          _
        // Predicated region
        $region53: #{mymodel_forward.1} parent=47 // pred_check
          %p277 = pneg %p64
        $region54: #{mymodel_forward.1} parent=47 // pred_check_branch
          %279 = sbr.rel (%p277) target = $region56
        $region55: #{mymodel_forward.1} parent=47 // pred_region
          %280 = dma.done [#allocation5], 2688
        $region56: #{mymodel_forward.1} parent=47 // pred_fallthru
          _
        %s281 = sand.u32 %s30, 1
        %s282 = scalar_lea.sflag [#allocation3], %s281
        %s283 = sand.u32 %s30, 1
        %s284 = smul.addr %s283, 24
        %s285 = scalar_lea.vmem [#allocation2], %s284
        %p286 = pneg %p43
        %p287 = pneg %p40
        %p288 = pneg %p64
        %p289 = pneg %p61
        %p290 = pneg %p85
        %p291 = pneg %p82
        %p292 = pneg %p106
        %p293 = pneg %p103
        %p294 = pneg %p127
        %p295 = pneg %p124
        %p296 = pneg %p148
        %p297 = pneg %p145
        %p298 = pneg %p169
        %p299 = pneg %p166
        %p300 = pneg %p195
        %p301 = pneg %p192
        %p302 = scmp.lt.s32.totalorder %s22, 1
        %s303 = scalar_select %p302, %s22, 1
        %s304 = smul.addr %s303, 8
        %s305 = scalar_lea.vmem %s7, %s304
        %p306 = scmp.lt.s32.totalorder %s22, 1
        %s307 = scalar_select %p306, %s22, 1
        %s308 = smul.addr %s307, 8
        %s309 = scalar_lea.vmem %s7, %s308
        %v311 = vld [vmem:[%s272] sm:$0xff]
        %v312 = vld [vmem:[%s272 + $0x8] sm:$0xff]
        %v313 = vld [vmem:[%s272 + $0x10] sm:$0xff]
        %v314 = vpack.c.bf16 %v311, %v311
        %v315 = vpack.c.bf16 %v312, %v312
        %v316 = vpack.c.bf16 %v313, %v313
        %v317 = vld [vmem:[#allocation4] sm:$0xf]
        %v318 = vld [vmem:[#allocation4 + $0x4] sm:$0xf]
        %v319 = vld [vmem:[#allocation4 + $0x8] sm:$0xf]
        %v320 = vld [vmem:[#allocation4 + $0xc] sm:$0xf]
        %v321 = vld [vmem:[#allocation4 + $0x10] sm:$0xf]
        %v322 = vld [vmem:[#allocation4 + $0x14] sm:$0xf]
        %v323 = vld [vmem:[#allocation4 + $0x18] sm:$0xf]
        %v324 = vld [vmem:[#allocation4 + $0x1c] sm:$0xf]
        %v325 = vld [vmem:[#allocation4 + $0x20] sm:$0xf]
        %v326 = vld [vmem:[#allocation4 + $0x24] sm:$0xf]
        %v327 = vld [vmem:[#allocation4 + $0x28] sm:$0xf]
        %v328 = vld [vmem:[#allocation4 + $0x2c] sm:$0xf]
        %v329 = vld [vmem:[#allocation4 + $0x30] sm:$0xf]
        %v330 = vld [vmem:[#allocation4 + $0x34] sm:$0xf]
        %v331 = vld [vmem:[#allocation4 + $0x38] sm:$0xf]
        %v332 = vld [vmem:[#allocation4 + $0x3c] sm:$0xf]
        %v333 = vld [vmem:[#allocation4 + $0x40] sm:$0xf]
        %v334 = vld [vmem:[#allocation4 + $0x44] sm:$0xf]
        %v335 = vld [vmem:[#allocation4 + $0x48] sm:$0xf]
        %v336 = vld [vmem:[#allocation4 + $0x4c] sm:$0xf]
        %v337 = vld [vmem:[#allocation4 + $0x50] sm:$0xf]
        %v338 = vld [vmem:[#allocation4 + $0x54] sm:$0xf]
        %v339 = vld [vmem:[#allocation4 + $0x58] sm:$0xf]
        %v340 = vld [vmem:[#allocation4 + $0x5c] sm:$0xf]
        %v341 = vld [vmem:[#allocation4 + $0x60] sm:$0xf]
        %v342 = vld [vmem:[#allocation4 + $0x64] sm:$0xf]
        %v343 = vld [vmem:[#allocation4 + $0x68] sm:$0xf]
        %v344 = vld [vmem:[#allocation4 + $0x6c] sm:$0xf]
        %v345 = vld [vmem:[#allocation4 + $0x70] sm:$0xf]
        %v346 = vld [vmem:[#allocation4 + $0x74] sm:$0xf]
        %v347 = vld [vmem:[#allocation4 + $0x78] sm:$0xf]
        %v348 = vld [vmem:[#allocation4 + $0x7c] sm:$0xf]
        %v349 = vld [vmem:[#allocation4 + $0x80] sm:$0xf]
        %v350 = vld [vmem:[#allocation4 + $0x84] sm:$0xf]
        %v351 = vld [vmem:[#allocation4 + $0x88] sm:$0xf]
        %v352 = vld [vmem:[#allocation4 + $0x8c] sm:$0xf]
        %v353 = vld [vmem:[#allocation4 + $0x90] sm:$0xf]
        %v354 = vld [vmem:[#allocation4 + $0x94] sm:$0xf]
        %v355 = vld [vmem:[#allocation4 + $0x98] sm:$0xf]
        %v356 = vld [vmem:[#allocation4 + $0x9c] sm:$0xf]
        %v357 = vld [vmem:[#allocation4 + $0xa0] sm:$0xf]
        %v358 = vld [vmem:[#allocation4 + $0xa4] sm:$0x3]
        %v359 = vld [vmem:[%s2] sm:$0x1]
        %v361 = vlaneseq
        %v362 = vshrl.u32 %v361, 7
        %v363 = vsub.s32 0, %v362
        %v364 = vrot.slane %v359, %v363
        %v408 = vunpack.c.l.b16 %v317
        %v409 = vunpack.c.l.b16 %v318
        %v410 = vunpack.c.l.b16 %v319
        %v411 = vunpack.c.l.b16 %v320
        %v412 = vunpack.c.l.b16 %v321
        %v413 = vunpack.c.l.b16 %v322
        %v414 = vunpack.c.l.b16 %v323
        %v415 = vunpack.c.l.b16 %v324
        %v416 = vunpack.c.l.b16 %v325
        %v417 = vunpack.c.l.b16 %v326
        %v418 = vunpack.c.l.b16 %v327
        %v419 = vunpack.c.l.b16 %v328
        %v420 = vunpack.c.l.b16 %v329
        %v421 = vunpack.c.l.b16 %v330
        %v422 = vunpack.c.l.b16 %v331
        %v423 = vunpack.c.l.b16 %v332
        %v424 = vunpack.c.l.b16 %v333
        %v425 = vunpack.c.l.b16 %v334
        %v426 = vunpack.c.l.b16 %v335
        %v427 = vunpack.c.l.b16 %v336
        %v428 = vunpack.c.l.b16 %v337
        %v429 = vunpack.c.l.b16 %v338
        %v430 = vunpack.c.l.b16 %v339
        %v431 = vunpack.c.l.b16 %v340
        %v432 = vunpack.c.l.b16 %v341
        %v433 = vunpack.c.l.b16 %v342
        %v434 = vunpack.c.l.b16 %v343
        %v435 = vunpack.c.l.b16 %v344
        %v436 = vunpack.c.l.b16 %v345
        %v437 = vunpack.c.l.b16 %v346
        %v438 = vunpack.c.l.b16 %v347
        %v439 = vunpack.c.l.b16 %v348
        %v440 = vunpack.c.l.b16 %v349
        %v441 = vunpack.c.l.b16 %v350
        %v442 = vunpack.c.l.b16 %v351
        %v443 = vunpack.c.l.b16 %v352
        %v444 = vunpack.c.l.b16 %v353
        %v445 = vunpack.c.l.b16 %v354
        %v446 = vunpack.c.l.b16 %v355
        %v447 = vunpack.c.l.b16 %v356
        %v448 = vunpack.c.l.b16 %v357
        %v449 = vunpack.c.l.b16 %v358
        %v450 = vpack.c.b16 %v409, %v408
        %v451 = vpack.c.b16 %v411, %v410
        %v452 = vpack.c.b16 %v413, %v412
        %v453 = vpack.c.b16 %v415, %v414
        %v454 = vpack.c.b16 %v417, %v416
        %v455 = vpack.c.b16 %v419, %v418
        %v456 = vpack.c.b16 %v421, %v420
        %v457 = vpack.c.b16 %v423, %v422
        %v458 = vpack.c.b16 %v425, %v424
        %v459 = vpack.c.b16 %v427, %v426
        %v460 = vpack.c.b16 %v429, %v428
        %v461 = vpack.c.b16 %v431, %v430
        %v462 = vpack.c.b16 %v433, %v432
        %v463 = vpack.c.b16 %v435, %v434
        %v464 = vpack.c.b16 %v437, %v436
        %v465 = vpack.c.b16 %v439, %v438
        %v466 = vpack.c.b16 %v441, %v440
        %v467 = vpack.c.b16 %v443, %v442
        %v468 = vpack.c.b16 %v445, %v444
        %v469 = vpack.c.b16 %v447, %v446
        %v470 = vpack.c.b16 %v449, %v448
        %vm491 = vcmask 613376
        %v493 = vsel %vm491, %v316, 0
        %vm495 = vcmask 1044480
        %vm496 = vcmask 1045504
        %v497 = vsel %vm495, 4294967295, 65535
        %v498 = vsel %vm496, %v497, 0
        %v500 = vand.u32 %v470, %v498
        %502 = vmatprep.subr.bf16.mxu0 0
        %503 = vmatpush1.bf16.msra.mxu0 %v457
        %504 = vmatprep.subr.bf16.mxu0 0
        %505 = vmatpush1.bf16.msra.mxu0 %v456
        %506 = vmatprep.subr.bf16.mxu0 0
        %507 = vmatpush1.bf16.msra.mxu0 %v455
        %508 = vmatprep.subr.bf16.mxu0 0
        %509 = vmatpush1.bf16.msra.mxu0 %v454
        %510 = vmatprep.subr.bf16.mxu0 0
        %511 = vmatpush1.bf16.msra.mxu0 %v453
        %512 = vmatprep.subr.bf16.mxu0 0
        %513 = vmatpush1.bf16.msra.mxu0 %v452
        %514 = vmatprep.subr.bf16.mxu0 0
        %515 = vmatpush1.bf16.msra.mxu0 %v451
        %516 = vmatprep.subr.bf16.mxu0 0
        %517 = vmatpush1.bf16.msra.mxu0 %v450
        %518 = vmatprep.subr.bf16.mxu0 0
        %519 = vmatpush2.bf16.msra.mxu0 %v465
        %520 = vmatprep.subr.bf16.mxu0 0
        %521 = vmatpush2.bf16.msra.mxu0 %v464
        %522 = vmatprep.subr.bf16.mxu0 0
        %523 = vmatpush2.bf16.msra.mxu0 %v463
        %524 = vmatprep.subr.bf16.mxu0 0
        %525 = vmatpush2.bf16.msra.mxu0 %v462
        %526 = vmatprep.subr.bf16.mxu0 0
        %527 = vmatpush2.bf16.msra.mxu0 %v461
        %528 = vmatprep.subr.bf16.mxu0 0
        %529 = vmatpush2.bf16.msra.mxu0 %v460
        %530 = vmatprep.subr.bf16.mxu0 0
        %531 = vmatpush2.bf16.msra.mxu0 %v459
        %532 = vmatprep.subr.bf16.mxu0 0
        %533 = vmatpush2.bf16.msra.mxu0 %v458
        %534 = vmatprep.mubr.bf16.mxu0 %v315
        %535 = vmatmul.mubr.bf16.gmra.mxu0 %v314
        %v536 = vpop.f32.mrf.mxu0
        %v537 = vadd.f32 %v364, %v536
        %v538 = vpop.f32.mrf.mxu0
        %v539 = vpop.f32.mrf.mxu0
        %v540 = vpop.f32.mrf.mxu0
        %541 = vdwg.mxu0
        %542 = vmatprep.subr.bf16.mxu0 0
        %543 = vmatpush1.bf16.msra.mxu0 0
        %544 = vmatprep.subr.bf16.mxu0 0
        %545 = vmatpush1.bf16.msra.mxu0 0
        %546 = vmatprep.subr.bf16.mxu0 0
        %547 = vmatpush1.bf16.msra.mxu0 0
        %548 = vmatprep.subr.bf16.mxu0 0
        %549 = vmatpush1.bf16.msra.mxu0 %v500
        %550 = vmatprep.subr.bf16.mxu0 0
        %551 = vmatpush1.bf16.msra.mxu0 %v469
        %552 = vmatprep.subr.bf16.mxu0 0
        %553 = vmatpush1.bf16.msra.mxu0 %v468
        %554 = vmatprep.subr.bf16.mxu0 0
        %555 = vmatpush1.bf16.msra.mxu0 %v467
        %556 = vmatprep.subr.bf16.mxu0 0
        %557 = vmatpush1.bf16.msra.mxu0 %v466
        %558 = vmatprep.subr.bf16.mxu0 0
        %559 = vmatpush2.bf16.msra.mxu0 0
        %560 = vmatprep.subr.bf16.mxu0 0
        %561 = vmatpush2.bf16.msra.mxu0 0
        %562 = vmatprep.subr.bf16.mxu0 0
        %563 = vmatpush2.bf16.msra.mxu0 0
        %564 = vmatprep.subr.bf16.mxu0 0
        %565 = vmatpush2.bf16.msra.mxu0 0
        %566 = vmatprep.subr.bf16.mxu0 0
        %567 = vmatpush2.bf16.msra.mxu0 0
        %568 = vmatprep.subr.bf16.mxu0 0
        %569 = vmatpush2.bf16.msra.mxu0 0
        %570 = vmatprep.subr.bf16.mxu0 0
        %571 = vmatpush2.bf16.msra.mxu0 0
        %572 = vmatprep.subr.bf16.mxu0 0
        %573 = vmatpush2.bf16.msra.mxu0 0
        %574 = vmatprep.mubr.bf16.mxu0 0
        %575 = vmatmul.mubr.bf16.gmra.mxu0 %v493
        %v576 = vpop.f32.mrf.mxu0
        %v577 = vadd.f32 %v537, %v576
        %v578 = vpop.f32.mrf.mxu0
        %v579 = vpop.f32.mrf.mxu0
        %v580 = vpop.f32.mrf.mxu0
        %581 = vdwg.mxu0
        %v582 = vmax.f32 %v577, 0.0
        %v583 = vpack.c.bf16 %v582, %v582
        %v584 = vld [vmem:[%s3] sm:$0xf]
        %v585 = vld [vmem:[%s3 + $0x4] sm:$0xf]
        %v586 = vld [vmem:[%s3 + $0x8] sm:$0xf]
        %v587 = vld [vmem:[%s3 + $0xc] sm:$0xf]
        %v588 = vld [vmem:[%s3 + $0x10] sm:$0xf]
        %v589 = vld [vmem:[%s3 + $0x14] sm:$0xf]
        %v590 = vld [vmem:[%s3 + $0x18] sm:$0xf]
        %v591 = vld [vmem:[%s3 + $0x1c] sm:$0xf]
        %v592 = vld [vmem:[%s3 + $0x20] sm:$0xf]
        %v593 = vld [vmem:[%s3 + $0x24] sm:$0xf]
        %v594 = vld [vmem:[%s3 + $0x28] sm:$0xf]
        %v595 = vld [vmem:[%s3 + $0x2c] sm:$0xf]
        %v596 = vld [vmem:[%s3 + $0x30] sm:$0xf]
        %v597 = vld [vmem:[%s3 + $0x34] sm:$0xf]
        %v598 = vld [vmem:[%s3 + $0x38] sm:$0xf]
        %v599 = vld [vmem:[%s3 + $0x3c] sm:$0xf]
        %v600 = vld [vmem:[%s4] sm:$0x1]
        %v602 = vlaneseq
        %v603 = vshrl.u32 %v602, 7
        %v604 = vsub.s32 0, %v603
        %v605 = vrot.slane %v600, %v604
        %v623 = vunpack.c.l.b16 %v584
        %v624 = vunpack.c.l.b16 %v585
        %v625 = vunpack.c.l.b16 %v586
        %v626 = vunpack.c.l.b16 %v587
        %v627 = vunpack.c.l.b16 %v588
        %v628 = vunpack.c.l.b16 %v589
        %v629 = vunpack.c.l.b16 %v590
        %v630 = vunpack.c.l.b16 %v591
        %v631 = vunpack.c.l.b16 %v592
        %v632 = vunpack.c.l.b16 %v593
        %v633 = vunpack.c.l.b16 %v594
        %v634 = vunpack.c.l.b16 %v595
        %v635 = vunpack.c.l.b16 %v596
        %v636 = vunpack.c.l.b16 %v597
        %v637 = vunpack.c.l.b16 %v598
        %v638 = vunpack.c.l.b16 %v599
        %v639 = vpack.c.b16 %v624, %v623
        %v640 = vpack.c.b16 %v626, %v625
        %v641 = vpack.c.b16 %v628, %v627
        %v642 = vpack.c.b16 %v630, %v629
        %v643 = vpack.c.b16 %v632, %v631
        %v644 = vpack.c.b16 %v634, %v633
        %v645 = vpack.c.b16 %v636, %v635
        %v646 = vpack.c.b16 %v638, %v637
        %655 = vmatprep.subr.bf16.mxu0 0
        %656 = vmatpush1.bf16.msra.mxu0 %v646
        %657 = vmatprep.subr.bf16.mxu0 0
        %658 = vmatpush1.bf16.msra.mxu0 %v645
        %659 = vmatprep.subr.bf16.mxu0 0
        %660 = vmatpush1.bf16.msra.mxu0 %v644
        %661 = vmatprep.subr.bf16.mxu0 0
        %662 = vmatpush1.bf16.msra.mxu0 %v643
        %663 = vmatprep.subr.bf16.mxu0 0
        %664 = vmatpush1.bf16.msra.mxu0 %v642
        %665 = vmatprep.subr.bf16.mxu0 0
        %666 = vmatpush1.bf16.msra.mxu0 %v641
        %667 = vmatprep.subr.bf16.mxu0 0
        %668 = vmatpush1.bf16.msra.mxu0 %v640
        %669 = vmatprep.subr.bf16.mxu0 0
        %670 = vmatpush1.bf16.msra.mxu0 %v639
        %671 = vmatprep.subr.bf16.mxu0 0
        %672 = vmatpush2.bf16.msra.mxu0 0
        %673 = vmatprep.subr.bf16.mxu0 0
        %674 = vmatpush2.bf16.msra.mxu0 0
        %675 = vmatprep.subr.bf16.mxu0 0
        %676 = vmatpush2.bf16.msra.mxu0 0
        %677 = vmatprep.subr.bf16.mxu0 0
        %678 = vmatpush2.bf16.msra.mxu0 0
        %679 = vmatprep.subr.bf16.mxu0 0
        %680 = vmatpush2.bf16.msra.mxu0 0
        %681 = vmatprep.subr.bf16.mxu0 0
        %682 = vmatpush2.bf16.msra.mxu0 0
        %683 = vmatprep.subr.bf16.mxu0 0
        %684 = vmatpush2.bf16.msra.mxu0 0
        %685 = vmatprep.subr.bf16.mxu0 0
        %686 = vmatpush2.bf16.msra.mxu0 0
        %687 = vmatprep.mubr.bf16.mxu0 0
        %688 = vmatmul.mubr.bf16.gmra.mxu0 %v583
        %v689 = vpop.f32.mrf.mxu0
        %v690 = vadd.f32 %v605, %v689
        %v691 = vpop.f32.mrf.mxu0
        %v692 = vpop.f32.mrf.mxu0
        %v693 = vpop.f32.mrf.mxu0
        %694 = vdwg.mxu0
        %v695 = vmax.f32 %v690, 0.0
        %v696 = vpack.c.bf16 %v695, %v695
        %v697 = vld [vmem:[%s5] sm:$0xf]
        %v698 = vld [vmem:[%s5 + $0x4] sm:$0xf]
        %v699 = vld [vmem:[%s5 + $0x8] sm:$0xf]
        %v700 = vld [vmem:[%s5 + $0xc] sm:$0xf]
        %v701 = vld [vmem:[%s5 + $0x10] sm:$0xf]
        %v702 = vld [vmem:[%s5 + $0x14] sm:$0xf]
        %v703 = vld [vmem:[%s5 + $0x18] sm:$0xf]
        %v704 = vld [vmem:[%s5 + $0x1c] sm:$0xf]
        %v705 = vld [vmem:[%s5 + $0x20] sm:$0xf]
        %v706 = vld [vmem:[%s5 + $0x24] sm:$0xf]
        %v707 = vld [vmem:[%s5 + $0x28] sm:$0xf]
        %v708 = vld [vmem:[%s5 + $0x2c] sm:$0xf]
        %v709 = vld [vmem:[%s5 + $0x30] sm:$0xf]
        %v710 = vld [vmem:[%s5 + $0x34] sm:$0xf]
        %v711 = vld [vmem:[%s5 + $0x38] sm:$0xf]
        %v712 = vld [vmem:[%s5 + $0x3c] sm:$0xf]
        %v713 = vld [vmem:[%s6] sm:$0x1]
        %v715 = vlaneseq
        %v716 = vshrl.u32 %v715, 7
        %v717 = vsub.s32 0, %v716
        %v718 = vrot.slane %v713, %v717
        %v736 = vunpack.c.l.b16 %v697
        %v737 = vunpack.c.l.b16 %v698
        %v738 = vunpack.c.l.b16 %v699
        %v739 = vunpack.c.l.b16 %v700
        %v740 = vunpack.c.l.b16 %v701
        %v741 = vunpack.c.l.b16 %v702
        %v742 = vunpack.c.l.b16 %v703
        %v743 = vunpack.c.l.b16 %v704
        %v744 = vunpack.c.l.b16 %v705
        %v745 = vunpack.c.l.b16 %v706
        %v746 = vunpack.c.l.b16 %v707
        %v747 = vunpack.c.l.b16 %v708
        %v748 = vunpack.c.l.b16 %v709
        %v749 = vunpack.c.l.b16 %v710
        %v750 = vunpack.c.l.b16 %v711
        %v751 = vunpack.c.l.b16 %v712
        %v752 = vpack.c.b16 %v737, %v736
        %v753 = vpack.c.b16 %v739, %v738
        %v754 = vpack.c.b16 %v741, %v740
        %v755 = vpack.c.b16 %v743, %v742
        %v756 = vpack.c.b16 %v745, %v744
        %v757 = vpack.c.b16 %v747, %v746
        %v758 = vpack.c.b16 %v749, %v748
        %v759 = vpack.c.b16 %v751, %v750
        %768 = vmatprep.subr.bf16.mxu0 0
        %769 = vmatpush1.bf16.msra.mxu0 %v759
        %770 = vmatprep.subr.bf16.mxu0 0
        %771 = vmatpush1.bf16.msra.mxu0 %v758
        %772 = vmatprep.subr.bf16.mxu0 0
        %773 = vmatpush1.bf16.msra.mxu0 %v757
        %774 = vmatprep.subr.bf16.mxu0 0
        %775 = vmatpush1.bf16.msra.mxu0 %v756
        %776 = vmatprep.subr.bf16.mxu0 0
        %777 = vmatpush1.bf16.msra.mxu0 %v755
        %778 = vmatprep.subr.bf16.mxu0 0
        %779 = vmatpush1.bf16.msra.mxu0 %v754
        %780 = vmatprep.subr.bf16.mxu0 0
        %781 = vmatpush1.bf16.msra.mxu0 %v753
        %782 = vmatprep.subr.bf16.mxu0 0
        %783 = vmatpush1.bf16.msra.mxu0 %v752
        %784 = vmatprep.subr.bf16.mxu0 0
        %785 = vmatpush2.bf16.msra.mxu0 0
        %786 = vmatprep.subr.bf16.mxu0 0
        %787 = vmatpush2.bf16.msra.mxu0 0
        %788 = vmatprep.subr.bf16.mxu0 0
        %789 = vmatpush2.bf16.msra.mxu0 0
        %790 = vmatprep.subr.bf16.mxu0 0
        %791 = vmatpush2.bf16.msra.mxu0 0
        %792 = vmatprep.subr.bf16.mxu0 0
        %793 = vmatpush2.bf16.msra.mxu0 0
        %794 = vmatprep.subr.bf16.mxu0 0
        %795 = vmatpush2.bf16.msra.mxu0 0
        %796 = vmatprep.subr.bf16.mxu0 0
        %797 = vmatpush2.bf16.msra.mxu0 0
        %798 = vmatprep.subr.bf16.mxu0 0
        %799 = vmatpush2.bf16.msra.mxu0 0
        %800 = vmatprep.mubr.bf16.mxu0 0
        %801 = vmatmul.mubr.bf16.gmra.mxu0 %v696
        %v802 = vpop.f32.mrf.mxu0
        %v803 = vadd.f32 %v718, %v802
        %v804 = vpop.f32.mrf.mxu0
        %v805 = vpop.f32.mrf.mxu0
        %v806 = vpop.f32.mrf.mxu0
        %807 = vdwg.mxu0
        %vm808 = vcmask 64512
        %809 = vst.msk [vmem:[%s309] sm:$0xff] %vm808, %v803
        %p810 = scmp.lt.s32.totalorder %s22, 1
        %s811 = scalar_select %p810, %s22, 1
        %s812 = smul.addr %s811, 8
        %s813 = scalar_lea.vmem %s7, %s812
        // Predicated region
        $region57: #{mymodel_forward.1} parent=47 // pred_check
          %p814 = pneg %p192
        $region58: #{mymodel_forward.1} parent=47 // pred_check_branch
          %816 = sbr.rel (%p814) target = $region60
        $region59: #{mymodel_forward.1} parent=47 // pred_region
          _
        $region60: #{mymodel_forward.1} parent=47 // pred_fallthru
          _
      $region48: #{mymodel_forward.1} parent=5 // pred_fallthru
        _
      %p817 = scmp.le.s32.totalorder 2, %s17
      // Predicated region
      $region61: #{mymodel_forward.1} parent=5 // pred_check
        %p818 = pneg %p817
      $region62: #{mymodel_forward.1} parent=5 // pred_check_branch
        %820 = sbr.rel (%p818) target = $region64
      $region63: #{mymodel_forward.1} parent=5 // pred_region
        %s821 = ssub.s32 %s17, 2
        // Predicated region
        $region65: #{mymodel_forward.1} parent=63 // pred_check
          %p822 = pneg %p198
        $region66: #{mymodel_forward.1} parent=63 // pred_check_branch
          %824 = sbr.rel (%p822) target = $region68
        $region67: #{mymodel_forward.1} parent=63 // pred_region
          %p825 = scmp.lt.s32.totalorder %s23, 1
          %s826 = scalar_select %p825, %s23, 1
          %s827 = smul.addr %s826, 8
          %s828 = scalar_lea.vmem %s7, %s827
        $region68: #{mymodel_forward.1} parent=63 // pred_fallthru
          _
      $region64: #{mymodel_forward.1} parent=5 // pred_fallthru
        _
    $region6: #{mymodel_forward.1} parent=1 // loop_footer
      %s21 = sadd.s32 1, %s17
    $region7: #{mymodel_forward.1} parent=1 // loop_footer_branch
      %16 = sbr.rel target = $region3
    $region8: #{mymodel_forward.1} parent=1 // loop_exit
      _
    %829 = vsyncpa [#allocation3], 1
    %s830 = scalar_lea.sflag [#allocation3], 1
    %831 = vsyncpa %s830, 1
    %832 = vsyncpa [#allocation5], 1

</llo_original>
